<compile_context>
chip_gen: v7x
topology: tpu7x:2x2x1
jax: 0.10.0
libtpu: 0.0.40
codegen_flags: <defaults>
</compile_context>

<pallas_src>
import functools

import jax
import jax.numpy as jnp
from jax.experimental import pallas as pl
from jax.experimental.pallas import tpu as pltpu

LANE = 128       # TPU lane width (vreg fast axis)
SUBLANE = 8      # f32 sublane tile
TILE_BYTES = 2 << 20   # ~2 MiB per x tile -> ~8 MiB double-buffered x+out in VMEM


def _round_up(n, k):
    return ((n + k - 1) // k) * k


def _residual_linear_kernel(x_ref, w_ref, b_ref, o_ref):
    # x_ref: (TM, HL)  w_ref: (HL, HL)  b_ref: (1, HL)  o_ref: (TM, HL)
    x = x_ref[...]
    # fn(x) = x @ W  -> MXU with f32 accumulation
    y = jnp.dot(x, w_ref[...], preferred_element_type=jnp.float32)
    # + bias (pre-cast f32) + residual x, fused on the VPU, lane-dense store
    o_ref[...] = (y + b_ref[...] + x.astype(jnp.float32)).astype(o_ref.dtype)


def residual_linear(x, w_bd, b_f, *, fold, tm_max=8192, min_tiles=2, io_dtype=None):
    """out = (x @ w + b) + x, fused in a single Pallas TPU kernel.

    x: [batch, seq, hidden]; w_bd: [hidden*fold, hidden*fold] block-diagonal
    kron(I_fold, w); b_f: [1, hidden*fold] tiled f32 bias.
    """
    batch, seq, hidden = x.shape
    m = batch * seq
    out_dtype = x.dtype
    h_lane = hidden * fold
    assert h_lane % LANE == 0
    assert w_bd.shape == (h_lane, h_lane)
    assert b_f.shape == (1, h_lane)

    # --- lane-dense packing: fold rows into the lane axis ---------------------
    # Pad at most (fold-1) rows so M is divisible by the fold; this tiny pad is
    # the only wrapper-side copy on the M axis.
    m_r = _round_up(m, fold)
    x2d = x.reshape(m, hidden)
    if m_r != m:
        x2d = jnp.pad(x2d, ((0, m_r - m), (0, 0)))
    m_f = m_r // fold
    x_f = x2d.reshape(m_f, h_lane)            # free row-major reshape

    if io_dtype is not None:
        # Optional narrow-I/O path (e.g. bf16): halves x/W DMA bytes; dot still
        # accumulates f32 and adds stay f32, output stays in out_dtype.
        x_f = x_f.astype(io_dtype)
        w_bd = w_bd.astype(io_dtype)
    itemsize = jnp.dtype(x_f.dtype).itemsize

    # --- balanced row tiling (remainder handled by Pallas block masking) ------
    # Cap tm by a per-tile VMEM byte budget, then split into >=min_tiles
    # balanced tiles so megacore has work and the pipeline can overlap.
    tm_cap = max(SUBLANE, (TILE_BYTES // (h_lane * itemsize)) // SUBLANE * SUBLANE)
    tm_cap = min(tm_cap, tm_max)
    n_tiles = max(min_tiles, pl.cdiv(m_f, tm_cap))
    tm = _round_up(pl.cdiv(m_f, n_tiles), SUBLANE)
    tm = min(tm, _round_up(m_f, SUBLANE))
    if tm >= m_f:
        tm = m_f                     # single block; block dim == array dim is legal
    grid = pl.cdiv(m_f, tm)          # partial last block is masked by Pallas

    cost = pl.CostEstimate(
        flops=2 * m_f * h_lane * h_lane,
        transcendentals=0,
        bytes_accessed=(m_f * h_lane * itemsize                            # x in
                        + m_f * h_lane * jnp.dtype(out_dtype).itemsize     # out
                        + w_bd.size * jnp.dtype(w_bd.dtype).itemsize
                        + b_f.size * 4),
    )

    out_f = pl.pallas_call(
        _residual_linear_kernel,
        out_shape=jax.ShapeDtypeStruct((m_f, h_lane), out_dtype),
        grid=(grid,),
        in_specs=[
            pl.BlockSpec((tm, h_lane), lambda i: (i, 0)),       # x: streamed tiles
            pl.BlockSpec((h_lane, h_lane), lambda i: (0, 0)),   # W: VMEM-resident
            pl.BlockSpec((1, h_lane), lambda i: (0, 0)),        # bias: VMEM-resident
        ],
        out_specs=pl.BlockSpec((tm, h_lane), lambda i: (i, 0)),
        compiler_params=pltpu.CompilerParams(
            # Independent row tiles -> shard grid across v7x's two TensorCores.
            dimension_semantics=("parallel",),
        ),
        cost_estimate=cost,
    )(x_f, w_bd, b_f)

    out2d = out_f.reshape(m_r, hidden)
    if m_r != m:
        out2d = out2d[:m]
    return out2d.reshape(batch, seq, hidden)


class Residual:
    """JAX mirror of the PyTorch Residual wrapper: out = fn(x) + x,
    with fn = Linear(hidden, hidden) fused into the Pallas kernel."""

    def __init__(self, w, b, *, tm_max=8192, io_dtype=None):
        hidden = w.shape[0]
        if hidden < LANE and LANE % hidden == 0:
            fold = LANE // hidden
        elif hidden % LANE == 0:
            fold = 1
        else:
            # TODO(synk): arbitrary hidden would need explicit lane padding; not
            # exercised by this module's shapes.
            raise NotImplementedError("hidden must divide (or be a multiple of) 128")
        self.fold = fold
        # Hoisted constants: block-diagonal weight and tiled f32 bias are built
        # once here, not on every forward.
        self.w_bd = jnp.kron(jnp.eye(fold, dtype=w.dtype), w) if fold > 1 else w
        self.b_f = jnp.tile(b.astype(jnp.float32), fold).reshape(1, hidden * fold)
        self._fwd = jax.jit(functools.partial(
            residual_linear, fold=fold, tm_max=tm_max, io_dtype=io_dtype))

    def __call__(self, x):
        return self._fwd(x, self.w_bd, self.b_f)


if __name__ == "__main__":
    key = jax.random.PRNGKey(0)
    k_x, k_w, k_b = jax.random.split(key, 3)

    batch, seq, hidden = 2, 8, 32
    x = jax.random.normal(k_x, (batch, seq, hidden), dtype=jnp.float32)
    # Deterministic synthetic parameters for fn = Linear(hidden, hidden)
    w = jax.random.normal(k_w, (hidden, hidden), dtype=jnp.float32) * (1.0 / hidden ** 0.5)
    b = jax.random.normal(k_b, (hidden,), dtype=jnp.float32) * 0.01

    mod = Residual(w, b)
    out = mod(x)
    out = jax.block_until_ready(out)

    # Pure-JAX reference check of the residual semantics: fn(x) + x
    ref = (jnp.einsum("bsh,hk->bsk", x, w) + b) + x
    assert out.shape == x.shape and out.dtype == x.dtype
    assert jnp.allclose(out, ref, atol=1e-4, rtol=1e-4)

    print("KERNEL_OK")
</pallas_src>

<mosaic_0001>
module attributes {stable_mosaic.version = 11 : i64} {
  func.func @_residual_linear_kernel(%arg0: i32, %arg1: memref<4x128xf32, #tpu.memory_space<vmem>>, %arg2: memref<128x128xf32, #tpu.memory_space<vmem>>, %arg3: memref<1x128xf32, #tpu.memory_space<vmem>>, %arg4: memref<4x128xf32, #tpu.memory_space<vmem>>) attributes {dimension_semantics = [#tpu.dimension_semantics<parallel>], iteration_bounds = array<i64: 1>, scalar_prefetch = 0 : i64, scratch_operands = 0 : i64, tpu.core_type = #tpu.core_type<tc>, window_params = [{transform_indices = @transform_0, window_bounds = array<i64: 4, 128>}, {pipeline_mode = #tpu.pipeline_mode<synchronous>, transform_indices = @transform_1, window_bounds = array<i64: 128, 128>}, {pipeline_mode = #tpu.pipeline_mode<synchronous>, transform_indices = @transform_2, window_bounds = array<i64: 1, 128>}, {transform_indices = @transform_3, window_bounds = array<i64: 4, 128>}]} {
    %c0 = arith.constant 0 : index
    %c0_0 = arith.constant 0 : index
    %0 = vector.load %arg1[%c0, %c0_0] : memref<4x128xf32, #tpu.memory_space<vmem>>, vector<4x128xf32>
    %c0_1 = arith.constant 0 : index
    %c0_2 = arith.constant 0 : index
    %1 = vector.load %arg2[%c0_1, %c0_2] : memref<128x128xf32, #tpu.memory_space<vmem>>, vector<128x128xf32>
    %cst = arith.constant dense<0.000000e+00> : vector<4x128xf32>
    %2 = tpu.matmul %0, %1, %cst {dimension_numbers = #tpu.dot_dimension_numbers<[1], [0], [0], [1], [0, 0, 1, 1], [], []>} : vector<4x128xf32>, vector<128x128xf32>, vector<4x128xf32> -> vector<4x128xf32>
    %c0_3 = arith.constant 0 : index
    %c0_4 = arith.constant 0 : index
    %3 = vector.load %arg3[%c0_3, %c0_4] : memref<1x128xf32, #tpu.memory_space<vmem>>, vector<1x128xf32>
    %4 = vector.broadcast %3 : vector<1x128xf32> to vector<4x128xf32>
    %5 = arith.addf %2, %4 : vector<4x128xf32>
    %6 = arith.addf %5, %0 : vector<4x128xf32>
    %c0_5 = arith.constant 0 : index
    %c0_6 = arith.constant 0 : index
    %7 = vector.load %arg4[%c0_5, %c0_6] : memref<4x128xf32, #tpu.memory_space<vmem>>, vector<4x128xf32>
    tpu.vector_store %arg4[%c0_5, %c0_6], %6 {strides = array<i32>} : memref<4x128xf32, #tpu.memory_space<vmem>>, vector<4x128xf32>,
    return
  }
  func.func @transform_0(%arg0: i32) -> (i32, i32) {
    %c0_i32 = arith.constant 0 : i32
    %c0_i32_0 = arith.constant 0 : i32
    return %arg0, %c0_i32 : i32, i32
  }
  func.func @transform_1(%arg0: i32) -> (i32, i32) {
    %c0_i32 = arith.constant 0 : i32
    %c0_i32_0 = arith.constant 0 : i32
    %c0_i32_1 = arith.constant 0 : i32
    return %c0_i32, %c0_i32_0 : i32, i32
  }
  func.func @transform_2(%arg0: i32) -> (i32, i32) {
    %c0_i32 = arith.constant 0 : i32
    %c0_i32_0 = arith.constant 0 : i32
    %c0_i32_1 = arith.constant 0 : i32
    return %c0_i32, %c0_i32_0 : i32, i32
  }
  func.func @transform_3(%arg0: i32) -> (i32, i32) {
    %c0_i32 = arith.constant 0 : i32
    %c0_i32_0 = arith.constant 0 : i32
    return %arg0, %c0_i32 : i32, i32
  }
}

</mosaic_0001>

<llo_original>
// kernel: residual_linear.1
$region0: #{residual_linear.1}
  #allocation0 [shape = 'u32[]', space=smem, size = 0x4, offset = 0x4, fixed_abs, tag = 'smem constant byte address 0x4 - core index']
  #allocation1 [shape = 'u32[144,128]{1,0:T(1,128)}', space=vmem, size = 0x12000, scoped, tag = 'internal scratch']
  %s0 = inlined_call_operand.vmem [shape: f32[4,128], index: 0, kind: input, shape index: {}]
  %s1 = inlined_call_operand.hbm [shape: f32[128,128], index: 1, kind: input, shape index: {}]
  %s2 = inlined_call_operand.vmem [shape: f32[1,128], index: 2, kind: input, shape index: {}]
  %s3 = inlined_call_operand.vmem [shape: f32[4,128], index: 3, kind: output, shape index: {}]
  %s4 = sld [smem:[#allocation0]]
  $region26: #{residual_linear.1} parent=0
    _
  %s6 = ssub.s32 1, %s4
  %s7 = scalar_select 0, %s6, %s4
  $region1: #{residual_linear.1} parent=0
    #allocation2 [shape = 'u8[65536]{0}', space=vmem, size = 0x10000, scoped, tag = 'input window, operand 1, single buffered']
    #allocation3 [shape = 's32[1]{0}', space=sflag, size = 0x4, scoped, tag = 'scoped memory for residual_linear.1']
    %8 = vsyncpa [#allocation3], 0
    // Predicated region
    $region2: #{residual_linear.1} parent=1 // pred_check
      _
    $region3: #{residual_linear.1} parent=1 // pred_check_branch
      %10 = sbr.rel (0) target = $region5
    $region4: #{residual_linear.1} parent=1 // pred_region
      _
    $region5: #{residual_linear.1} parent=1 // pred_fallthru
      _
    // Predicated region
    $region6: #{residual_linear.1} parent=1 // pred_check
      _
    $region7: #{residual_linear.1} parent=1 // pred_check_branch
      %12 = sbr.rel (0) target = $region9
    $region8: #{residual_linear.1} parent=1 // pred_region
      %s14 = ssub.s32 2048, 2048
      %15 = vsyncadd [#allocation3], %s14
      %s16 = sshll.u32 [#allocation2], 4
      %s17 = int_to_ptr.vmem [resolvable:$true] %s16
      %22 = dma.hbm_to_vmem [thread:$0]  %s1, 2048, %s17, [#allocation3], 128, 128, 8
    $region9: #{residual_linear.1} parent=1 // pred_fallthru
      _
    // Predicated region
    $region10: #{residual_linear.1} parent=1 // pred_check
      _
    $region11: #{residual_linear.1} parent=1 // pred_check_branch
      %24 = sbr.rel (0) target = $region13
    $region12: #{residual_linear.1} parent=1 // pred_region
      _
    $region13: #{residual_linear.1} parent=1 // pred_fallthru
      _
    // Predicated region
    $region14: #{residual_linear.1} parent=1 // pred_check
      _
    $region15: #{residual_linear.1} parent=1 // pred_check_branch
      %26 = sbr.rel (0) target = $region17
    $region16: #{residual_linear.1} parent=1 // pred_region
      %27 = dma.done [#allocation3], 2048
    $region17: #{residual_linear.1} parent=1 // pred_fallthru
      _
    %v28 = vld [vmem:[%s0] sm:$0xf]
    %v29 = vld [vmem:[#allocation2] sm:$0xff]
    %v30 = vld [vmem:[#allocation2 + $0x8] sm:$0xff]
    %v31 = vld [vmem:[#allocation2 + $0x10] sm:$0xff]
    %v32 = vld [vmem:[#allocation2 + $0x18] sm:$0xff]
    %v33 = vld [vmem:[#allocation2 + $0x20] sm:$0xff]
    %v34 = vld [vmem:[#allocation2 + $0x28] sm:$0xff]
    %v35 = vld [vmem:[#allocation2 + $0x30] sm:$0xff]
    %v36 = vld [vmem:[#allocation2 + $0x38] sm:$0xff]
    %v37 = vld [vmem:[#allocation2 + $0x40] sm:$0xff]
    %v38 = vld [vmem:[#allocation2 + $0x48] sm:$0xff]
    %v39 = vld [vmem:[#allocation2 + $0x50] sm:$0xff]
    %v40 = vld [vmem:[#allocation2 + $0x58] sm:$0xff]
    %v41 = vld [vmem:[#allocation2 + $0x60] sm:$0xff]
    %v42 = vld [vmem:[#allocation2 + $0x68] sm:$0xff]
    %v43 = vld [vmem:[#allocation2 + $0x70] sm:$0xff]
    %v44 = vld [vmem:[#allocation2 + $0x78] sm:$0xff]
    %v45 = vld [vmem:[%s2] sm:$0x1]
    %v47 = vlaneseq
    %v48 = vshrl.u32 %v47, 7
    %v49 = vsub.s32 0, %v48
    %v50 = vrot.slane %v45, %v49
    %52 = vmatprep.subr.mxu0 0.0
    %53 = vmatpush1.msra.mxu0 %v29
    %54 = vmatprep.subr.mxu0 0.0
    %55 = vmatpush1.msra.mxu0 %v30
    %56 = vmatprep.subr.mxu0 0.0
    %57 = vmatpush1.msra.mxu0 %v31
    %58 = vmatprep.subr.mxu0 0.0
    %59 = vmatpush1.msra.mxu0 %v32
    %60 = vmatprep.subr.mxu0 0.0
    %61 = vmatpush1.msra.mxu0 %v33
    %62 = vmatprep.subr.mxu0 0.0
    %63 = vmatpush1.msra.mxu0 %v34
    %64 = vmatprep.subr.mxu0 0.0
    %65 = vmatpush1.msra.mxu0 %v35
    %66 = vmatprep.subr.mxu0 0.0
    %67 = vmatpush1.msra.mxu0 %v36
    %68 = vmatprep.subr.mxu0 0.0
    %69 = vmatpush1.msra.mxu0 %v37
    %70 = vmatprep.subr.mxu0 0.0
    %71 = vmatpush1.msra.mxu0 %v38
    %72 = vmatprep.subr.mxu0 0.0
    %73 = vmatpush1.msra.mxu0 %v39
    %74 = vmatprep.subr.mxu0 0.0
    %75 = vmatpush1.msra.mxu0 %v40
    %76 = vmatprep.subr.mxu0 0.0
    %77 = vmatpush1.msra.mxu0 %v41
    %78 = vmatprep.subr.mxu0 0.0
    %79 = vmatpush1.msra.mxu0 %v42
    %80 = vmatprep.subr.mxu0 0.0
    %81 = vmatpush1.msra.mxu0 %v43
    %82 = vmatprep.subr.mxu0 0.0
    %83 = vmatpush1.msra.mxu0 %v44
    %84 = vmatprep.subr.mxu0 0.0
    %85 = vmatpush1.msra.mxu0 0.0
    %86 = vmatprep.subr.mxu0 0.0
    %87 = vmatpush1.msra.mxu0 0.0
    %88 = vmatprep.subr.mxu0 0.0
    %89 = vmatpush1.msra.mxu0 0.0
    %90 = vmatprep.subr.mxu0 0.0
    %91 = vmatpush1.msra.mxu0 0.0
    %92 = vmatprep.subr.mxu0 0.0
    %93 = vmatpush1.msra.mxu0 0.0
    %94 = vmatprep.subr.mxu0 0.0
    %95 = vmatpush1.msra.mxu0 0.0
    %96 = vmatprep.subr.mxu0 0.0
    %97 = vmatpush1.msra.mxu0 0.0
    %98 = vmatprep.subr.mxu0 0.0
    %99 = vmatpush1.msra.mxu0 0.0
    %100 = vmatprep.subr.mxu0 0.0
    %101 = vmatpush1.msra.mxu0 0.0
    %102 = vmatprep.subr.mxu0 0.0
    %103 = vmatpush1.msra.mxu0 0.0
    %104 = vmatprep.subr.mxu0 0.0
    %105 = vmatpush1.msra.mxu0 0.0
    %106 = vmatprep.subr.mxu0 0.0
    %107 = vmatpush1.msra.mxu0 0.0
    %108 = vmatprep.subr.mxu0 0.0
    %109 = vmatpush1.msra.mxu0 0.0
    %110 = vmatprep.subr.mxu0 0.0
    %111 = vmatpush1.msra.mxu0 0.0
    %112 = vmatprep.subr.mxu0 0.0
    %113 = vmatpush1.msra.mxu0 0.0
    %114 = vmatprep.subr.mxu0 0.0
    %115 = vmatpush1.msra.mxu0 0.0
    %116 = vmatprep.mubr.f32.mxu0 0.0
    %117 = vmatmul.mubr.f32.gmra.mrb[0].mxu0 %v28
    %v118 = vpop.f32.mrb[0].mxu0
    %v119 = vadd.f32 %v50, %v118
    %v120 = vpop.f32.mrb[0].mxu0
    %121 = vdwg.mxu0
    %v122 = vadd.f32 %v119, %v28
    %123 = vst [vmem:[%s3] sm:$0xf] %v122
    // Predicated region
    $region18: #{residual_linear.1} parent=1 // pred_check
      _
    $region19: #{residual_linear.1} parent=1 // pred_check_branch
      %125 = sbr.rel (0) target = $region21
    $region20: #{residual_linear.1} parent=1 // pred_region
      _
    $region21: #{residual_linear.1} parent=1 // pred_fallthru
      _
    // Predicated region
    $region22: #{residual_linear.1} parent=1 // pred_check
      _
    $region23: #{residual_linear.1} parent=1 // pred_check_branch
      %127 = sbr.rel (0) target = $region25
    $region24: #{residual_linear.1} parent=1 // pred_region
      _
    $region25: #{residual_linear.1} parent=1 // pred_fallthru
      _
    %128 = vsyncpa [#allocation3], 1

</llo_original>
